<compile_context>
chip_gen: v7x
topology: tpu7x:2x2x1
jax: 0.10.0
libtpu: 0.0.40
codegen_flags: <defaults>
</compile_context>

<pallas_src>
import functools

import jax
import jax.numpy as jnp
from jax import lax
from jax.experimental import pallas as pl
from jax.experimental.pallas import tpu as pltpu


def _label_smoothing_ce_kernel(x_ref, t_ref, loss_ref, *, confidence,
                               smoothing):
    # confidence / smoothing are Python floats -> compile-time constants.
    x = x_ref[...].astype(jnp.float32)            # (BN, C) f32 (bf16 upcast)
    t = t_ref[...]                                # (BN, 1) int32
    c = x.shape[-1]

    # Numerically stable logsumexp pieces (all reductions are row-local, so
    # garbage rows of a ragged last tile never contaminate valid rows).
    m = jnp.max(x, axis=-1, keepdims=True)        # (BN, 1)
    shifted = x - m                               # (BN, C)
    lse = jnp.log(jnp.sum(jnp.exp(shifted), axis=-1, keepdims=True))  # (BN,1)

    # loss = conf*(lse - shifted[t]) + smooth*(lse - mean(shifted))
    #      = lse - conf*shifted[t] - (smooth/C)*sum(shifted)
    # shifted[t] is gathered via a masked lane-reduction; no (BN, C) weight
    # array and no extra full-width multiply (VALU relief on v7x / bf16-v6e).
    col = lax.broadcasted_iota(jnp.int32, (1, c), 1)       # tiny (1, C) iota
    sum_shift = jnp.sum(shifted, axis=-1, keepdims=True)   # (BN, 1)
    tgt_shift = jnp.sum(jnp.where(col == t, shifted, 0.0),
                        axis=-1, keepdims=True)            # (BN, 1)

    base = smoothing / c                          # Python float
    loss_ref[...] = lse - (confidence * tgt_shift + base * sum_shift)


def _round_up(x, m):
    return ((x + m - 1) // m) * m


def label_smoothing_cross_entropy(x, target, *, smoothing=0.1, block_n=None,
                                  vmem_budget_bytes=12 << 20):
    """Pallas implementation of timm's LabelSmoothingCrossEntropy.forward."""
    assert smoothing < 1.0
    confidence = 1.0 - smoothing

    n, c = x.shape
    out_dtype = x.dtype
    dtype_bytes = jnp.dtype(x.dtype).itemsize
    pack = {4: 8, 2: 16, 1: 32}.get(dtype_bytes, 8)   # sublane packing rows

    if block_n is None:
        # Real per-row VMEM cost of one tile:
        #   2 * C * dtype_bytes   (input tile, double-buffered by Pallas)
        # + ~4 * C * 4            (f32 intermediates: upcast/shifted/exp/select)
        # Budget keeps the total under v5e's 16 MiB scoped-VMEM default while
        # still giving >=512-row tiles for typical C (~85% of HBM roofline).
        per_row_bytes = c * (2 * dtype_bytes + 4 * 4)
        cap = max(pack, (vmem_budget_bytes // per_row_bytes) // pack * pack)
        # Megacore: guarantee >= 2 grid tiles whenever the batch can split,
        # so both v7x TensorCores get work (no-op on v5e/v6e).
        split_cap = _round_up(max(1, (n + 1) // 2), pack)
        block_n = max(pack, min(cap, split_cap))
    else:
        block_n = max(pack, _round_up(block_n, pack))

    t2d = target.astype(jnp.int32).reshape(n, 1)      # tiny; no logits copy
    num_tiles = pl.cdiv(n, block_n)                   # ragged last tile OK

    kernel = functools.partial(
        _label_smoothing_ce_kernel,
        confidence=float(confidence),
        smoothing=float(smoothing),
    )

    per_row = pl.pallas_call(
        kernel,
        out_shape=jax.ShapeDtypeStruct((n, 1), jnp.float32),
        grid_spec=pltpu.PrefetchScalarGridSpec(
            num_scalar_prefetch=0,
            grid=(num_tiles,),
            in_specs=[
                pl.BlockSpec((block_n, c), lambda i: (i, 0)),
                pl.BlockSpec((block_n, 1), lambda i: (i, 0)),
            ],
            out_specs=pl.BlockSpec((block_n, 1), lambda i: (i, 0)),
        ),
        compiler_params=pltpu.CompilerParams(
            dimension_semantics=("parallel",)),
    )(x, t2d)

    # per_row has exactly n valid rows (out-of-bounds writes of the ragged
    # last tile are masked by Pallas). Tiny final reduction in the wrapper.
    loss = jnp.mean(per_row)
    return loss.astype(out_dtype)


def _reference(x, target, smoothing=0.1):
    confidence = 1.0 - smoothing
    logprobs = jax.nn.log_softmax(x.astype(jnp.float32), axis=-1)
    nll = -jnp.take_along_axis(logprobs, target[:, None].astype(jnp.int32),
                               axis=-1)[:, 0]
    smooth = -jnp.mean(logprobs, axis=-1)
    return jnp.mean(confidence * nll + smoothing * smooth)


if __name__ == "__main__":
    key = jax.random.PRNGKey(0)
    kx, kt, kx2, kt2, kx3, kt3 = jax.random.split(key, 6)

    # Case 1: small, evenly divisible batch (single tile).
    N, C = 8, 32
    x = jax.random.normal(kx, (N, C), dtype=jnp.float32)
    target = jax.random.randint(kt, (N,), 0, C, dtype=jnp.int32)
    loss = jax.block_until_ready(
        label_smoothing_cross_entropy(x, target, smoothing=0.1))
    ref = _reference(x, target, smoothing=0.1)
    assert jnp.allclose(loss, ref, rtol=1e-5, atol=1e-5), (loss, ref)

    # Case 2: odd batch (exercises the ragged last tile, no padding copy).
    N2, C2 = 13, 40
    x2 = jax.random.normal(kx2, (N2, C2), dtype=jnp.float32)
    target2 = jax.random.randint(kt2, (N2,), 0, C2, dtype=jnp.int32)
    loss2 = jax.block_until_ready(
        label_smoothing_cross_entropy(x2, target2, smoothing=0.1))
    ref2 = _reference(x2, target2, smoothing=0.1)
    assert jnp.allclose(loss2, ref2, rtol=1e-5, atol=1e-5), (loss2, ref2)

    # Case 3: bf16 logits, multi-tile + ragged (streams narrow, computes f32).
    N3, C3 = 300, 160
    x3 = jax.random.normal(kx3, (N3, C3), dtype=jnp.float32).astype(jnp.bfloat16)
    target3 = jax.random.randint(kt3, (N3,), 0, C3, dtype=jnp.int32)
    loss3 = jax.block_until_ready(
        label_smoothing_cross_entropy(x3, target3, smoothing=0.1))
    ref3 = _reference(x3, target3, smoothing=0.1)
    assert jnp.allclose(loss3.astype(jnp.float32), ref3, rtol=2e-2, atol=2e-2), (
        loss3, ref3)

    print("KERNEL_OK")
</pallas_src>

<mosaic_0001>
module attributes {stable_mosaic.version = 11 : i64} {
  func.func @_label_smoothing_ce_kernel(%arg0: i32, %arg1: memref<8x32xf32, #tpu.memory_space<vmem>>, %arg2: memref<8x1xi32, #tpu.memory_space<vmem>>, %arg3: memref<8x1xf32, #tpu.memory_space<vmem>>) attributes {dimension_semantics = [#tpu.dimension_semantics<parallel>], iteration_bounds = array<i64: 1>, scalar_prefetch = 0 : i64, scratch_operands = 0 : i64, tpu.core_type = #tpu.core_type<tc>, window_params = [{transform_indices = @transform_0, window_bounds = array<i64: 8, 32>}, {transform_indices = @transform_1, window_bounds = array<i64: 8, 1>}, {transform_indices = @transform_2, window_bounds = array<i64: 8, 1>}]} {
    %c0 = arith.constant 0 : index
    %c0_0 = arith.constant 0 : index
    %0 = vector.load %arg1[%c0, %c0_0] : memref<8x32xf32, #tpu.memory_space<vmem>>, vector<8x32xf32>
    %c0_1 = arith.constant 0 : index
    %c0_2 = arith.constant 0 : index
    %1 = vector.load %arg2[%c0_1, %c0_2] : memref<8x1xi32, #tpu.memory_space<vmem>>, vector<8x1xi32>
    %cst = arith.constant dense<0xFF800000> : vector<8xf32>
    %2 = vector.multi_reduction <maximumf>, %0, %cst [1] : vector<8x32xf32> to vector<8xf32>
    %3 = vector.shape_cast %2 : vector<8xf32> to vector<8x1xf32>
    %4 = vector.broadcast %3 : vector<8x1xf32> to vector<8x32xf32>
    %5 = arith.subf %0, %4 : vector<8x32xf32>
    %6 = math.exp %5 : vector<8x32xf32>
    %cst_3 = arith.constant dense<0.000000e+00> : vector<8xf32>
    %7 = vector.multi_reduction <add>, %6, %cst_3 [1] : vector<8x32xf32> to vector<8xf32>
    %8 = vector.shape_cast %7 : vector<8xf32> to vector<8x1xf32>
    %9 = math.log %8 : vector<8x1xf32>
    %10 = tpu.iota {dimensions = array<i32: 1>} : vector<1x32xi32>
    %cst_4 = arith.constant dense<0.000000e+00> : vector<8xf32>
    %11 = vector.multi_reduction <add>, %5, %cst_4 [1] : vector<8x32xf32> to vector<8xf32>
    %12 = vector.shape_cast %11 : vector<8xf32> to vector<8x1xf32>
    %13 = vector.broadcast %10 : vector<1x32xi32> to vector<8x32xi32>
    %14 = vector.broadcast %1 : vector<8x1xi32> to vector<8x32xi32>
    %15 = arith.cmpi eq, %13, %14 : vector<8x32xi32>
    %cst_5 = arith.constant 0.000000e+00 : f32
    %16 = vector.broadcast %cst_5 : f32 to vector<8x32xf32>
    %17 = arith.select %15, %5, %16 : vector<8x32xi1>, vector<8x32xf32>
    %cst_6 = arith.constant dense<0.000000e+00> : vector<8xf32>
    %18 = vector.multi_reduction <add>, %17, %cst_6 [1] : vector<8x32xf32> to vector<8xf32>
    %19 = vector.shape_cast %18 : vector<8xf32> to vector<8x1xf32>
    %cst_7 = arith.constant 0.899999976 : f32
    %20 = vector.broadcast %cst_7 : f32 to vector<8x1xf32>
    %21 = arith.mulf %20, %19 : vector<8x1xf32>
    %cst_8 = arith.constant 3.125000e-03 : f32
    %22 = vector.broadcast %cst_8 : f32 to vector<8x1xf32>
    %23 = arith.mulf %22, %12 : vector<8x1xf32>
    %24 = arith.addf %21, %23 : vector<8x1xf32>
    %25 = arith.subf %9, %24 : vector<8x1xf32>
    %c0_9 = arith.constant 0 : index
    %c0_10 = arith.constant 0 : index
    %26 = vector.load %arg3[%c0_9, %c0_10] : memref<8x1xf32, #tpu.memory_space<vmem>>, vector<8x1xf32>
    tpu.vector_store %arg3[%c0_9, %c0_10], %25 {strides = array<i32>} : memref<8x1xf32, #tpu.memory_space<vmem>>, vector<8x1xf32>,
    return
  }
  func.func @transform_0(%arg0: i32) -> (i32, i32) {
    %c0_i32 = arith.constant 0 : i32
    %c0_i32_0 = arith.constant 0 : i32
    return %arg0, %c0_i32 : i32, i32
  }
  func.func @transform_1(%arg0: i32) -> (i32, i32) {
    %c0_i32 = arith.constant 0 : i32
    %c0_i32_0 = arith.constant 0 : i32
    return %arg0, %c0_i32 : i32, i32
  }
  func.func @transform_2(%arg0: i32) -> (i32, i32) {
    %c0_i32 = arith.constant 0 : i32
    %c0_i32_0 = arith.constant 0 : i32
    return %arg0, %c0_i32 : i32, i32
  }
}

</mosaic_0001>

<llo_original>
// kernel: tpu_custom_call.1
$region0: #{tpu_custom_call.1}
  #allocation0 [shape = 'u32[]', space=smem, size = 0x4, offset = 0x4, fixed_abs, tag = 'smem constant byte address 0x4 - core index']
  #allocation1 [shape = 'u32[144,128]{1,0:T(1,128)}', space=vmem, size = 0x12000, scoped, tag = 'internal scratch']
  %s0 = inlined_call_operand.vmem [shape: f32[8,32], index: 0, kind: input, shape index: {}]
  %s1 = inlined_call_operand.vmem [shape: s32[8,1], index: 1, kind: input, shape index: {}]
  %s2 = inlined_call_operand.vmem [shape: f32[8,1], index: 2, kind: output, shape index: {}]
  %s3 = sld [smem:[#allocation0]]
  $region18: #{tpu_custom_call.1} parent=0
    _
  %s5 = ssub.s32 1, %s3
  %s6 = scalar_select 0, %s5, %s3
  // Predicated region
  $region2: #{tpu_custom_call.1} parent=0 // pred_check
    _
  $region3: #{tpu_custom_call.1} parent=0 // pred_check_branch
    %8 = sbr.rel (0) target = $region5
  $region4: #{tpu_custom_call.1} parent=0 // pred_region
    _
  $region5: #{tpu_custom_call.1} parent=0 // pred_fallthru
    _
  // Predicated region
  $region6: #{tpu_custom_call.1} parent=0 // pred_check
    _
  $region7: #{tpu_custom_call.1} parent=0 // pred_check_branch
    %10 = sbr.rel (0) target = $region9
  $region8: #{tpu_custom_call.1} parent=0 // pred_region
    _
  $region9: #{tpu_custom_call.1} parent=0 // pred_fallthru
    _
  %v11 = vld [vmem:[%s0] sm:$0xff]
  %v12 = vld [vmem:[%s1] sm:$0xff]
  %vm13 = vcmask 261120
  %v14 = vsel %vm13, %v11, -inf
  %15 = vmax.xlane.f32.xlu0 %v14
  %v16 = vpop.xlane.xlu0 %15
  %v17 = vsub.f32 %v11, %v16
  %v18 = vmul.f32 %v17, 1.442695
  %v19 = vpow.pop %v18
  %v20 = vsel %vm13, %v19, 0.0
  %21 = vadd.xlane.f32.xlu0 %v20
  %v22 = vpop.xlane.xlu0 %21
  %v23 = vlog2.pop %v22
  %v24 = vmul.f32 %v23, 0.6931472
  %v25 = vlaneseq
  %v26 = vand.u32 %v25, 127
  %v27 = vsel %vm13, %v17, 0.0
  %28 = vadd.xlane.f32.xlu0 %v27
  %v29 = vpop.xlane.xlu0 %28
  %30 = vset.pattern.permute.xlu0 0
  %31 = vperm.xlu0 %30, %v12
  %v32 = vpop.permute.xlu0 %31
  %vm33 = vcmp.eq.s32.totalorder %v26, %v32
  %v34 = vsel %vm33, %v17, 0.0
  %v35 = vsel %vm13, %v34, 0.0
  %36 = vadd.xlane.f32.xlu0 %v35
  %v37 = vpop.xlane.xlu0 %36
  %v38 = vmul.f32 %v37, 0.9
  %v39 = vmul.f32 %v29, 0.003125
  %v40 = vadd.f32 %v38, %v39
  %v41 = vsub.f32 %v24, %v40
  %vm42 = vcmask 7168
  %43 = vst.msk [vmem:[%s2] sm:$0xff] %vm42, %v41
  // Predicated region
  $region10: #{tpu_custom_call.1} parent=0 // pred_check
    _
  $region11: #{tpu_custom_call.1} parent=0 // pred_check_branch
    %45 = sbr.rel (0) target = $region13
  $region12: #{tpu_custom_call.1} parent=0 // pred_region
    _
  $region13: #{tpu_custom_call.1} parent=0 // pred_fallthru
    _
  // Predicated region
  $region14: #{tpu_custom_call.1} parent=0 // pred_check
    _
  $region15: #{tpu_custom_call.1} parent=0 // pred_check_branch
    %47 = sbr.rel (0) target = $region17
  $region16: #{tpu_custom_call.1} parent=0 // pred_region
    _
  $region17: #{tpu_custom_call.1} parent=0 // pred_fallthru
    _

</llo_original>
